<compile_context>
chip_gen: v5e
topology: v5e:2x2
jax: 0.10.0
libtpu: 0.0.40
codegen_flags: <defaults>
</compile_context>

<pallas_src>
import functools

import jax
import jax.numpy as jnp
from jax.experimental import pallas as pl
from jax.experimental.pallas import tpu as pltpu

SELU_ALPHA = 1.6732632423543772
SELU_SCALE = 1.0507009873554805


def _round_up(v, m):
    return ((v + m - 1) // m) * m


def _net_kernel(x_ref, w1_ref, b1_ref, w2_ref, b2_ref, o_ref, *, relu_flag):
    # fc1: x [TB, F] @ w1_t [F, H] -> [TB, H]  (weights pre-transposed, no relayout)
    h = jnp.dot(x_ref[...], w1_ref[...], preferred_element_type=jnp.float32)
    h = h + b1_ref[...]  # b1 is (1, H), broadcasts over batch rows
    if relu_flag:
        h = jnp.maximum(h, 0.0)
    else:
        # SELU: scale * (h if h > 0 else alpha * (exp(h) - 1)); exp arg clamped <= 0
        # so there are no inf intermediates on the unselected branch (EUP op, ~free).
        h = SELU_SCALE * jnp.where(
            h > 0.0, h, SELU_ALPHA * (jnp.exp(jnp.minimum(h, 0.0)) - 1.0)
        )
    # out: h [TB, H] @ w2_t [H, N] -> [TB, N]; narrow (N-wide) store, masked vst.
    y = jnp.dot(h, w2_ref[...], preferred_element_type=jnp.float32)
    o_ref[...] = (y + b2_ref[...]).astype(o_ref.dtype)


def prep_params(w1, b1, w2, b2):
    """One-time parameter prep (do NOT call per forward step).

    Transposes PyTorch-style [out, in] weights to [in, out] and reshapes biases to
    2-D rows so the kernel does plain row-major dots with resident weights.
    """
    return w1.T, b1.reshape(1, -1), w2.T, b2.reshape(1, -1)


@functools.partial(jax.jit, static_argnames=("relu_flag", "tile_b"))
def net_forward(x, w1_t, b1_2d, w2_t, b2_2d, *, relu_flag=True, tile_b=1024):
    """Pallas implementation of Net.forward.

    x:     [B, n_features] float32
    w1_t:  [n_features, hidden], b1_2d: [1, hidden]
    w2_t:  [hidden, n_actions],  b2_2d: [1, n_actions]
    returns: [B, n_actions] float32
    """
    B, n_features = x.shape
    hidden = w1_t.shape[1]
    n_actions = w2_t.shape[1]

    # Batch tile: large tiles amortize the ~0.35us/step overhead, but cap at ~B/2
    # (rounded to sublane multiple) so big batches give >= 2 grid steps, letting the
    # "parallel" axis shard across both TensorCores on v7x.
    tb = min(tile_b, _round_up(pl.cdiv(B, 2), 8))
    if tb >= B:
        tb = B  # single block covering the full batch (legal even if B % 8 != 0)
    grid = (pl.cdiv(B, tb),)

    kernel = functools.partial(_net_kernel, relu_flag=relu_flag)

    out = pl.pallas_call(
        kernel,
        out_shape=jax.ShapeDtypeStruct((B, n_actions), jnp.float32),
        grid=grid,
        in_specs=[
            pl.BlockSpec((tb, n_features), lambda i: (i, 0)),        # x: tiled over batch
            pl.BlockSpec((n_features, hidden), lambda i: (0, 0)),    # w1_t: resident
            pl.BlockSpec((1, hidden), lambda i: (0, 0)),             # b1: resident
            pl.BlockSpec((hidden, n_actions), lambda i: (0, 0)),     # w2_t: resident
            pl.BlockSpec((1, n_actions), lambda i: (0, 0)),          # b2: resident
        ],
        out_specs=pl.BlockSpec((tb, n_actions), lambda i: (i, 0)),   # narrow output
        compiler_params=pltpu.CompilerParams(
            dimension_semantics=("parallel",),  # batch axis -> both TCs on v7x
        ),
    )(x, w1_t, b1_2d, w2_t, b2_2d)
    return out


def init_params(key, n_actions, n_features, hidden_size=20):
    """Matches the PyTorch init: weights ~ N(0, 0.3), biases = 0.1."""
    k1, k2 = jax.random.split(key)
    w1 = 0.3 * jax.random.normal(k1, (hidden_size, n_features), jnp.float32)
    b1 = jnp.full((hidden_size,), 0.1, jnp.float32)
    w2 = 0.3 * jax.random.normal(k2, (n_actions, hidden_size), jnp.float32)
    b2 = jnp.full((n_actions,), 0.1, jnp.float32)
    return w1, b1, w2, b2


def _ref_forward(x, w1, b1, w2, b2, relu_flag):
    h = x @ w1.T + b1
    if relu_flag:
        h = jnp.maximum(h, 0.0)
    else:
        h = SELU_SCALE * jnp.where(h > 0.0, h, SELU_ALPHA * (jnp.exp(h) - 1.0))
    return h @ w2.T + b2


if __name__ == "__main__":
    key = jax.random.PRNGKey(0)
    kx, kp, kx2 = jax.random.split(key, 3)

    # Small shapes consistent with the module: Net(n_actions=4, n_features=16, hidden_size=20)
    batch, n_features, hidden_size, n_actions = 8, 16, 20, 4

    x = jax.random.normal(kx, (batch, n_features), jnp.float32)
    w1, b1, w2, b2 = init_params(kp, n_actions, n_features, hidden_size)
    w1_t, b1_2d, w2_t, b2_2d = prep_params(w1, b1, w2, b2)  # one-time prep

    # relu_flag=True path (default in the module), single grid step.
    out = net_forward(x, w1_t, b1_2d, w2_t, b2_2d, relu_flag=True)
    jax.block_until_ready(out)
    y_ref = _ref_forward(x, w1, b1, w2, b2, relu_flag=True)
    assert out.shape == (batch, n_actions)
    assert jnp.allclose(out, y_ref, atol=1e-5, rtol=1e-5), "relu mismatch vs reference"

    # SELU path with a larger batch: multiple grid steps + masked edge block (200 % 64 != 0).
    batch2 = 200
    x2 = jax.random.normal(kx2, (batch2, n_features), jnp.float32)
    out_selu = net_forward(x2, w1_t, b1_2d, w2_t, b2_2d, relu_flag=False, tile_b=64)
    jax.block_until_ready(out_selu)
    y2_ref = _ref_forward(x2, w1, b1, w2, b2, relu_flag=False)
    assert out_selu.shape == (batch2, n_actions)
    assert jnp.allclose(out_selu, y2_ref, atol=1e-5, rtol=1e-5), "selu mismatch vs reference"

    # Default tile path (exercises the >=2-grid-step cap for v7x sharding).
    out_big = net_forward(x2, w1_t, b1_2d, w2_t, b2_2d, relu_flag=True)
    jax.block_until_ready(out_big)
    yb_ref = _ref_forward(x2, w1, b1, w2, b2, relu_flag=True)
    assert jnp.allclose(out_big, yb_ref, atol=1e-5, rtol=1e-5), "relu big-batch mismatch"

    print("KERNEL_OK")
</pallas_src>

<mosaic_0001>
module attributes {stable_mosaic.version = 11 : i64} {
  func.func @_net_kernel(%arg0: i32, %arg1: memref<8x16xf32, #tpu.memory_space<vmem>>, %arg2: memref<16x20xf32, #tpu.memory_space<vmem>>, %arg3: memref<1x20xf32, #tpu.memory_space<vmem>>, %arg4: memref<20x4xf32, #tpu.memory_space<vmem>>, %arg5: memref<1x4xf32, #tpu.memory_space<vmem>>, %arg6: memref<8x4xf32, #tpu.memory_space<vmem>>) attributes {dimension_semantics = [#tpu.dimension_semantics<parallel>], iteration_bounds = array<i64: 1>, scalar_prefetch = 0 : i64, scratch_operands = 0 : i64, tpu.core_type = #tpu.core_type<tc>, window_params = [{transform_indices = @transform_0, window_bounds = array<i64: 8, 16>}, {pipeline_mode = #tpu.pipeline_mode<synchronous>, transform_indices = @transform_1, window_bounds = array<i64: 16, 20>}, {pipeline_mode = #tpu.pipeline_mode<synchronous>, transform_indices = @transform_2, window_bounds = array<i64: 1, 20>}, {pipeline_mode = #tpu.pipeline_mode<synchronous>, transform_indices = @transform_3, window_bounds = array<i64: 20, 4>}, {pipeline_mode = #tpu.pipeline_mode<synchronous>, transform_indices = @transform_4, window_bounds = array<i64: 1, 4>}, {transform_indices = @transform_5, window_bounds = array<i64: 8, 4>}]} {
    %c0 = arith.constant 0 : index
    %c0_0 = arith.constant 0 : index
    %0 = vector.load %arg1[%c0, %c0_0] : memref<8x16xf32, #tpu.memory_space<vmem>>, vector<8x16xf32>
    %c0_1 = arith.constant 0 : index
    %c0_2 = arith.constant 0 : index
    %1 = vector.load %arg2[%c0_1, %c0_2] : memref<16x20xf32, #tpu.memory_space<vmem>>, vector<16x20xf32>
    %cst = arith.constant dense<0.000000e+00> : vector<8x20xf32>
    %2 = tpu.matmul %0, %1, %cst {dimension_numbers = #tpu.dot_dimension_numbers<[1], [0], [0], [1], [0, 0, 1, 1], [], []>} : vector<8x16xf32>, vector<16x20xf32>, vector<8x20xf32> -> vector<8x20xf32>
    %c0_3 = arith.constant 0 : index
    %c0_4 = arith.constant 0 : index
    %3 = vector.load %arg3[%c0_3, %c0_4] : memref<1x20xf32, #tpu.memory_space<vmem>>, vector<1x20xf32>
    %4 = vector.broadcast %3 : vector<1x20xf32> to vector<8x20xf32>
    %5 = arith.addf %2, %4 : vector<8x20xf32>
    %cst_5 = arith.constant 0.000000e+00 : f32
    %6 = vector.broadcast %cst_5 : f32 to vector<8x20xf32>
    %7 = arith.maximumf %5, %6 : vector<8x20xf32>
    %c0_6 = arith.constant 0 : index
    %c0_7 = arith.constant 0 : index
    %8 = vector.load %arg4[%c0_6, %c0_7] : memref<20x4xf32, #tpu.memory_space<vmem>>, vector<20x4xf32>
    %cst_8 = arith.constant dense<0.000000e+00> : vector<8x4xf32>
    %9 = tpu.matmul %7, %8, %cst_8 {dimension_numbers = #tpu.dot_dimension_numbers<[1], [0], [0], [1], [0, 0, 1, 1], [], []>} : vector<8x20xf32>, vector<20x4xf32>, vector<8x4xf32> -> vector<8x4xf32>
    %c0_9 = arith.constant 0 : index
    %c0_10 = arith.constant 0 : index
    %10 = vector.load %arg5[%c0_9, %c0_10] : memref<1x4xf32, #tpu.memory_space<vmem>>, vector<1x4xf32>
    %11 = vector.broadcast %10 : vector<1x4xf32> to vector<8x4xf32>
    %12 = arith.addf %9, %11 : vector<8x4xf32>
    %c0_11 = arith.constant 0 : index
    %c0_12 = arith.constant 0 : index
    %13 = vector.load %arg6[%c0_11, %c0_12] : memref<8x4xf32, #tpu.memory_space<vmem>>, vector<8x4xf32>
    tpu.vector_store %arg6[%c0_11, %c0_12], %12 {strides = array<i32>} : memref<8x4xf32, #tpu.memory_space<vmem>>, vector<8x4xf32>,
    return
  }
  func.func @transform_0(%arg0: i32) -> (i32, i32) {
    %c0_i32 = arith.constant 0 : i32
    %c0_i32_0 = arith.constant 0 : i32
    return %arg0, %c0_i32 : i32, i32
  }
  func.func @transform_1(%arg0: i32) -> (i32, i32) {
    %c0_i32 = arith.constant 0 : i32
    %c0_i32_0 = arith.constant 0 : i32
    %c0_i32_1 = arith.constant 0 : i32
    return %c0_i32, %c0_i32_0 : i32, i32
  }
  func.func @transform_2(%arg0: i32) -> (i32, i32) {
    %c0_i32 = arith.constant 0 : i32
    %c0_i32_0 = arith.constant 0 : i32
    %c0_i32_1 = arith.constant 0 : i32
    return %c0_i32, %c0_i32_0 : i32, i32
  }
  func.func @transform_3(%arg0: i32) -> (i32, i32) {
    %c0_i32 = arith.constant 0 : i32
    %c0_i32_0 = arith.constant 0 : i32
    %c0_i32_1 = arith.constant 0 : i32
    return %c0_i32, %c0_i32_0 : i32, i32
  }
  func.func @transform_4(%arg0: i32) -> (i32, i32) {
    %c0_i32 = arith.constant 0 : i32
    %c0_i32_0 = arith.constant 0 : i32
    %c0_i32_1 = arith.constant 0 : i32
    return %c0_i32, %c0_i32_0 : i32, i32
  }
  func.func @transform_5(%arg0: i32) -> (i32, i32) {
    %c0_i32 = arith.constant 0 : i32
    %c0_i32_0 = arith.constant 0 : i32
    return %arg0, %c0_i32 : i32, i32
  }
}

</mosaic_0001>

<llo_original>
// kernel: net_forward.1
$region0: #{net_forward.1}
  #allocation0 [shape = 'u32[]', space=smem, size = 0x4, offset = 0x4, fixed_abs, tag = 'smem constant byte address 0x4 - core index']
  #allocation1 [shape = 'u32[72,128]{1,0:T(1,128)}', space=vmem, size = 0x9000, scoped, tag = 'internal scratch']
  %s0 = inlined_call_operand.vmem [shape: f32[8,16], index: 0, kind: input, shape index: {}]
  %s1 = inlined_call_operand.vmem [shape: f32[16,20], index: 1, kind: input, shape index: {}]
  %s2 = inlined_call_operand.vmem [shape: f32[1,20], index: 2, kind: input, shape index: {}]
  %s3 = inlined_call_operand.vmem [shape: f32[20,4], index: 3, kind: input, shape index: {}]
  %s4 = inlined_call_operand.vmem [shape: f32[1,4], index: 4, kind: input, shape index: {}]
  %s5 = inlined_call_operand.vmem [shape: f32[8,4], index: 5, kind: output, shape index: {}]
  %s6 = sld [smem:[#allocation0]]
  $region30: #{net_forward.1} parent=0
    _
  %s8 = ssub.s32 1, %s6
  %s9 = scalar_select 0, %s8, %s6
  // Predicated region
  $region2: #{net_forward.1} parent=0 // pred_check
    _
  $region3: #{net_forward.1} parent=0 // pred_check_branch
    %11 = sbr.rel (0) target = $region5
  $region4: #{net_forward.1} parent=0 // pred_region
    _
  $region5: #{net_forward.1} parent=0 // pred_fallthru
    _
  // Predicated region
  $region6: #{net_forward.1} parent=0 // pred_check
    _
  $region7: #{net_forward.1} parent=0 // pred_check_branch
    %13 = sbr.rel (0) target = $region9
  $region8: #{net_forward.1} parent=0 // pred_region
    _
  $region9: #{net_forward.1} parent=0 // pred_fallthru
    _
  // Predicated region
  $region10: #{net_forward.1} parent=0 // pred_check
    _
  $region11: #{net_forward.1} parent=0 // pred_check_branch
    %15 = sbr.rel (0) target = $region13
  $region12: #{net_forward.1} parent=0 // pred_region
    _
  $region13: #{net_forward.1} parent=0 // pred_fallthru
    _
  // Predicated region
  $region14: #{net_forward.1} parent=0 // pred_check
    _
  $region15: #{net_forward.1} parent=0 // pred_check_branch
    %17 = sbr.rel (0) target = $region17
  $region16: #{net_forward.1} parent=0 // pred_region
    _
  $region17: #{net_forward.1} parent=0 // pred_fallthru
    _
  // Predicated region
  $region18: #{net_forward.1} parent=0 // pred_check
    _
  $region19: #{net_forward.1} parent=0 // pred_check_branch
    %19 = sbr.rel (0) target = $region21
  $region20: #{net_forward.1} parent=0 // pred_region
    _
  $region21: #{net_forward.1} parent=0 // pred_fallthru
    _
  %v20 = vld [vmem:[%s0] sm:$0xff]
  %v21 = vld [vmem:[%s1] sm:$0xff]
  %v22 = vld [vmem:[%s1 + $0x8] sm:$0xff]
  %v23 = vld [vmem:[%s2] sm:$0x1]
  %v25 = vperm.slane %v23, 0
  %vm27 = vcmask 130048
  %v29 = vsel %vm27, %v20, 0
  %31 = vmatpush.msra.mxu0 0.0
  %32 = vmatpush.msra.mxu0 0.0
  %33 = vmatpush.msra.mxu0 0.0
  %34 = vmatpush.msra.mxu0 0.0
  %35 = vmatpush.msra.mxu0 0.0
  %36 = vmatpush.msra.mxu0 0.0
  %37 = vmatpush.msra.mxu0 0.0
  %38 = vmatpush.msra.mxu0 0.0
  %39 = vmatpush.msra.mxu0 0.0
  %40 = vmatpush.msra.mxu0 0.0
  %41 = vmatpush.msra.mxu0 0.0
  %42 = vmatpush.msra.mxu0 0.0
  %43 = vmatpush.msra.mxu0 0.0
  %44 = vmatpush.msra.mxu0 0.0
  %45 = vmatpush.msra.mxu0 %v22
  %46 = vmatpush.msra.mxu0 %v21
  %47 = vmatmul.f32.gmra.mxu0 %v29
  %v48 = vpop.f32.mrf.mxu0
  %v49 = vadd.f32 %v25, %v48
  %50 = vdwg.mxu0
  %v51 = vmax.f32 %v49, 0.0
  %v52 = vld [vmem:[%s3] sm:$0xff]
  %v53 = vld [vmem:[%s3 + $0x8] sm:$0xff]
  %v54 = vld [vmem:[%s3 + $0x10] sm:$0xf]
  %v55 = vld [vmem:[%s4] sm:$0x1]
  %v57 = vperm.slane %v55, 0
  %vm59 = vcmask 162816
  %v61 = vsel %vm59, %v51, 0
  %vm63 = vcmask 1043456
  %v65 = vsel %vm63, %v54, 0
  %67 = vmatpush.msra.mxu0 0.0
  %68 = vmatpush.msra.mxu0 0.0
  %69 = vmatpush.msra.mxu0 0.0
  %70 = vmatpush.msra.mxu0 0.0
  %71 = vmatpush.msra.mxu0 0.0
  %72 = vmatpush.msra.mxu0 0.0
  %73 = vmatpush.msra.mxu0 0.0
  %74 = vmatpush.msra.mxu0 0.0
  %75 = vmatpush.msra.mxu0 0.0
  %76 = vmatpush.msra.mxu0 0.0
  %77 = vmatpush.msra.mxu0 0.0
  %78 = vmatpush.msra.mxu0 0.0
  %79 = vmatpush.msra.mxu0 0.0
  %80 = vmatpush.msra.mxu0 %v65
  %81 = vmatpush.msra.mxu0 %v53
  %82 = vmatpush.msra.mxu0 %v52
  %83 = vmatmul.f32.gmra.mxu0 %v61
  %v84 = vpop.f32.mrf.mxu0
  %v85 = vadd.f32 %v57, %v84
  %86 = vdwg.mxu0
  %vm87 = vcmask 31744
  %88 = vst.msk [vmem:[%s5] sm:$0xff] %vm87, %v85
  // Predicated region
  $region22: #{net_forward.1} parent=0 // pred_check
    _
  $region23: #{net_forward.1} parent=0 // pred_check_branch
    %90 = sbr.rel (0) target = $region25
  $region24: #{net_forward.1} parent=0 // pred_region
    _
  $region25: #{net_forward.1} parent=0 // pred_fallthru
    _
  // Predicated region
  $region26: #{net_forward.1} parent=0 // pred_check
    _
  $region27: #{net_forward.1} parent=0 // pred_check_branch
    %92 = sbr.rel (0) target = $region29
  $region28: #{net_forward.1} parent=0 // pred_region
    _
  $region29: #{net_forward.1} parent=0 // pred_fallthru
    _

</llo_original>
